<compile_context>
chip_gen: v5e
topology: v5e:2x2
jax: 0.10.0
libtpu: 0.0.40
codegen_flags: <defaults>
</compile_context>

<pallas_src>
import jax
import jax.numpy as jnp
from jax.experimental import pallas as pl
from jax.experimental.pallas import tpu as pltpu


def _round_up(x: int, m: int) -> int:
    return (x + m - 1) // m * m


def _cdiv(a: int, b: int) -> int:
    return (a + b - 1) // b


def _make_harmonic_kernel(force_constant: float, n3: int, tk: int,
                          k_steps: int, need_mask: bool):
    # Plain Python scalars in the closure -> lowered as immediates (no
    # "kernel captures constants" issue).
    kf = float(force_constant)

    def kernel(pos_ref, r0_ref, out_ref):
        # pos_ref: (ts, tk)  systems on sublanes, coordinates on lanes
        # r0_ref : (1,  tk)  shared equilibrium slice (broadcast over ts)
        # out_ref: (1,  ts)  lane-dense per-system energies for this step
        d = pos_ref[...].astype(jnp.float32) - r0_ref[...].astype(jnp.float32)
        dd = d * d
        if need_mask:
            # Last K block is ragged: zero out lanes past the real n3 so stale
            # VMEM data cannot contribute to the sum.
            kk = pl.program_id(1)
            lane = jax.lax.broadcasted_iota(jnp.int32, dd.shape, 1)
            dd = jnp.where(kk * tk + lane < n3, dd, 0.0)
        partial = kf * jnp.sum(dd, axis=-1, keepdims=True)       # (ts, 1)
        row = jnp.transpose(partial, (1, 0))                      # (1, ts)
        if k_steps == 1:
            out_ref[...] = row.astype(out_ref.dtype)
        else:
            @pl.when(pl.program_id(1) == 0)
            def _init():
                out_ref[...] = jnp.zeros_like(out_ref)
            out_ref[...] += row.astype(out_ref.dtype)

    return kernel


def harmonic_energy(positions: jax.Array,
                    equilibrium_positions: jax.Array,
                    force_constant: float,
                    *,
                    target_block_bytes: int = 2 << 20,   # ~2 MiB / positions block
                    min_grid_steps: int = 8) -> jax.Array:
    """Compute (n_systems, 1) harmonic energies with a Pallas TPU kernel.

    positions:              (n_systems, n_atoms, 3)
    equilibrium_positions:  (n_atoms, 3)
    """
    n_systems, n_atoms, three = positions.shape
    assert three == 3
    assert equilibrium_positions.shape == (n_atoms, 3)
    n3 = n_atoms * 3

    # Free reshapes (collapse contiguous minor dims) -- no HBM copies, no astype.
    pos = positions.reshape(n_systems, n3)
    r0 = equilibrium_positions.reshape(1, n3)
    item = jnp.dtype(pos.dtype).itemsize

    # Rows padded to a multiple of 8 only (sublane granule); garbage rows are
    # sliced off after the kernel.
    n_rows = _round_up(max(n_systems, 1), 8)
    if n_rows != n_systems:
        pos = jnp.pad(pos, ((0, n_rows - n_systems), (0, 0)))

    # Lane (K) tiling only when a minimum-height (8, n3) block is too big.
    if 8 * n3 * item <= 2 * target_block_bytes:
        tk, k_steps, need_mask = n3, 1, False           # full-width rows, no pad
    else:
        tk = max(128, (target_block_bytes // (8 * item)) // 128 * 128)
        k_steps = _cdiv(n3, tk)
        need_mask = (n3 % tk) != 0

    # System tile: byte-targeted, capped so the grid keeps >= min_grid_steps
    # (keeps both v7x TensorCores busy on the "parallel" axis).
    ts_bytes = max(8, (target_block_bytes // (tk * item)) // 8 * 8)
    ts_steps = _round_up(_cdiv(n_rows, min_grid_steps), 8)
    ts = max(8, min(ts_bytes, ts_steps))
    n_steps = _cdiv(n_rows, ts)                          # ragged last block OK

    kernel = _make_harmonic_kernel(force_constant, n3, tk, k_steps, need_mask)

    # VMEM budget for the chosen tiles (double-buffered, sublane/lane padded).
    tk_pad = _round_up(tk, 128)
    need = (2 * ts * tk_pad * item            # positions blocks
            + 2 * 8 * tk_pad * item           # r0 blocks
            + 2 * 8 * _round_up(ts, 128) * 4)  # lane-dense out blocks
    vmem_limit = int(min(max(2 * need, 16 << 20), 40 << 20))

    out = pl.pallas_call(
        kernel,
        out_shape=jax.ShapeDtypeStruct((n_steps, ts), jnp.float32),
        grid_spec=pltpu.PrefetchScalarGridSpec(
            num_scalar_prefetch=0,
            grid=(n_steps, k_steps),
            in_specs=[
                pl.BlockSpec((ts, tk), lambda i, k: (i, k)),   # streamed systems
                pl.BlockSpec((1, tk), lambda i, k: (0, k)),    # shared r0
            ],
            out_specs=pl.BlockSpec((1, ts), lambda i, k: (i, 0)),
        ),
        compiler_params=pltpu.CompilerParams(
            dimension_semantics=("parallel", "arbitrary"),
            vmem_limit_bytes=vmem_limit,
        ),
    )(pos, r0)

    energy = out.reshape(-1)[:n_systems][:, None]
    return energy.astype(positions.dtype)


def harmonic_energy_ref(positions, equilibrium_positions, force_constant):
    d = positions.astype(jnp.float32) - equilibrium_positions.astype(jnp.float32)[None]
    return jnp.sum(force_constant * d * d, axis=(1, 2))[:, None]


if __name__ == "__main__":
    key = jax.random.PRNGKey(0)
    n_systems, n_atoms = 2, 8
    force_constant = 2.5  # energy unit / (length unit)^2

    k_pos, k_r0 = jax.random.split(key)
    equilibrium_positions = jax.random.normal(k_r0, (n_atoms, 3), dtype=jnp.float32)
    positions = equilibrium_positions[None] + 0.1 * jax.random.normal(
        k_pos, (n_systems, n_atoms, 3), dtype=jnp.float32
    )

    energy = harmonic_energy(positions, equilibrium_positions, force_constant)
    energy = jax.block_until_ready(energy)

    ref = harmonic_energy_ref(positions, equilibrium_positions, force_constant)
    assert energy.shape == (n_systems, 1), energy.shape
    assert jnp.allclose(energy, ref, rtol=1e-5, atol=1e-5), (energy, ref)

    print("KERNEL_OK")
</pallas_src>

<mosaic_0001>
module attributes {stable_mosaic.version = 11 : i64} {
  func.func @kernel(%arg0: i32, %arg1: i32, %arg2: memref<8x24xf32, #tpu.memory_space<vmem>>, %arg3: memref<1x24xf32, #tpu.memory_space<vmem>>, %arg4: memref<1x8xf32, #tpu.memory_space<vmem>>) attributes {dimension_semantics = [#tpu.dimension_semantics<parallel>, #tpu.dimension_semantics<arbitrary>], iteration_bounds = array<i64: 1, 1>, scalar_prefetch = 0 : i64, scratch_operands = 0 : i64, tpu.core_type = #tpu.core_type<tc>, window_params = [{transform_indices = @transform_0, window_bounds = array<i64: 8, 24>}, {transform_indices = @transform_1, window_bounds = array<i64: 1, 24>}, {transform_indices = @transform_2, window_bounds = array<i64: 1, 8>}]} {
    %c0 = arith.constant 0 : index
    %c0_0 = arith.constant 0 : index
    %0 = vector.load %arg2[%c0, %c0_0] : memref<8x24xf32, #tpu.memory_space<vmem>>, vector<8x24xf32>
    %c0_1 = arith.constant 0 : index
    %c0_2 = arith.constant 0 : index
    %1 = vector.load %arg3[%c0_1, %c0_2] : memref<1x24xf32, #tpu.memory_space<vmem>>, vector<1x24xf32>
    %2 = vector.broadcast %1 : vector<1x24xf32> to vector<8x24xf32>
    %3 = arith.subf %0, %2 : vector<8x24xf32>
    %4 = arith.mulf %3, %3 : vector<8x24xf32>
    %cst = arith.constant dense<0.000000e+00> : vector<8xf32>
    %5 = vector.multi_reduction <add>, %4, %cst [1] : vector<8x24xf32> to vector<8xf32>
    %6 = vector.shape_cast %5 : vector<8xf32> to vector<8x1xf32>
    %cst_3 = arith.constant 2.500000e+00 : f32
    %7 = vector.broadcast %cst_3 : f32 to vector<8x1xf32>
    %8 = arith.mulf %7, %6 : vector<8x1xf32>
    %9 = tpu.transpose %8, [1, 0] : vector<8x1xf32> -> vector<1x8xf32>
    %c0_4 = arith.constant 0 : index
    %c0_5 = arith.constant 0 : index
    %10 = vector.load %arg4[%c0_4, %c0_5] : memref<1x8xf32, #tpu.memory_space<vmem>>, vector<1x8xf32>
    tpu.vector_store %arg4[%c0_4, %c0_5], %9 {strides = array<i32>} : memref<1x8xf32, #tpu.memory_space<vmem>>, vector<1x8xf32>,
    return
  }
  func.func @transform_0(%arg0: i32, %arg1: i32) -> (i32, i32) {
    %c0_i32 = arith.constant 0 : i32
    return %arg0, %arg1 : i32, i32
  }
  func.func @transform_1(%arg0: i32, %arg1: i32) -> (i32, i32) {
    %c0_i32 = arith.constant 0 : i32
    %c0_i32_0 = arith.constant 0 : i32
    return %c0_i32, %arg1 : i32, i32
  }
  func.func @transform_2(%arg0: i32, %arg1: i32) -> (i32, i32) {
    %c0_i32 = arith.constant 0 : i32
    %c0_i32_0 = arith.constant 0 : i32
    return %arg0, %c0_i32 : i32, i32
  }
}

</mosaic_0001>

<llo_original>
// kernel: tpu_custom_call.1
$region0: #{tpu_custom_call.1}
  #allocation0 [shape = 'u32[]', space=smem, size = 0x4, offset = 0x4, fixed_abs, tag = 'smem constant byte address 0x4 - core index']
  #allocation1 [shape = 'u32[72,128]{1,0:T(1,128)}', space=vmem, size = 0x9000, scoped, tag = 'internal scratch']
  %s0 = inlined_call_operand.hbm [shape: f32[8,24], index: 0, kind: input, shape index: {}]
  %s1 = inlined_call_operand.hbm [shape: f32[1,24], index: 1, kind: input, shape index: {}]
  %s2 = inlined_call_operand.hbm [shape: f32[1,8], index: 2, kind: output, shape index: {}]
  %s3 = sld [smem:[#allocation0]]
  $region26: #{tpu_custom_call.1} parent=0
    _
  %s5 = ssub.s32 1, %s3
  %s6 = scalar_select 0, %s5, %s3
  $region1: #{tpu_custom_call.1} parent=0
    #allocation2 [shape = 'u8[4096]{0}', space=vmem, size = 0x1000, scoped, tag = 'input window, operand 0, single buffered']
    #allocation3 [shape = 's32[1]{0}', space=sflag, size = 0x4, scoped, tag = 'scoped memory for tpu_custom_call.1']
    #allocation4 [shape = 's32[1]{0}', space=sflag, size = 0x4, scoped, tag = 'scoped memory for tpu_custom_call.1']
    #allocation5 [shape = 'u8[512]{0}', space=vmem, size = 0x400, scoped, tag = 'input window, operand 1, single buffered']
    #allocation6 [shape = 's32[1]{0}', space=sflag, size = 0x4, scoped, tag = 'scoped memory for tpu_custom_call.1']
    #allocation7 [shape = 'u8[512]{0}', space=vmem, size = 0x400, scoped, tag = 'output window, operand 0, single buffered']
    %7 = vsyncpa [#allocation3], 0
    %8 = vsyncpa [#allocation6], 0
    %9 = vsyncpa [#allocation4], 0
    // Predicated region
    $region2: #{tpu_custom_call.1} parent=1 // pred_check
      _
    $region3: #{tpu_custom_call.1} parent=1 // pred_check_branch
      %11 = sbr.rel (0) target = $region5
    $region4: #{tpu_custom_call.1} parent=1 // pred_region
      %13 = vsyncadd [#allocation3], 0
      %s15 = sshll.u32 %s0, 4
      %s16 = int_to_ptr.hbm [resolvable:$true] %s15
      %s17 = sshll.u32 [#allocation2], 4
      %s18 = int_to_ptr.vmem [resolvable:$true] %s17
      %20 = dma.hbm_to_vmem [thread:$0]  %s16, 128, %s18, [#allocation3]
    $region5: #{tpu_custom_call.1} parent=1 // pred_fallthru
      _
    // Predicated region
    $region6: #{tpu_custom_call.1} parent=1 // pred_check
      _
    $region7: #{tpu_custom_call.1} parent=1 // pred_check_branch
      %22 = sbr.rel (0) target = $region9
    $region8: #{tpu_custom_call.1} parent=1 // pred_region
      %24 = vsyncadd [#allocation6], 0
      %s26 = sshll.u32 %s1, 4
      %s27 = int_to_ptr.hbm [resolvable:$true] %s26
      %s28 = sshll.u32 [#allocation5], 4
      %s29 = int_to_ptr.vmem [resolvable:$true] %s28
      %31 = dma.hbm_to_vmem [thread:$0]  %s27, 16, %s29, [#allocation6]
    $region9: #{tpu_custom_call.1} parent=1 // pred_fallthru
      _
    // Predicated region
    $region10: #{tpu_custom_call.1} parent=1 // pred_check
      _
    $region11: #{tpu_custom_call.1} parent=1 // pred_check_branch
      %33 = sbr.rel (0) target = $region13
    $region12: #{tpu_custom_call.1} parent=1 // pred_region
      %35 = dma.done [#allocation3], 128
    $region13: #{tpu_custom_call.1} parent=1 // pred_fallthru
      _
    // Predicated region
    $region14: #{tpu_custom_call.1} parent=1 // pred_check
      _
    $region15: #{tpu_custom_call.1} parent=1 // pred_check_branch
      %37 = sbr.rel (0) target = $region17
    $region16: #{tpu_custom_call.1} parent=1 // pred_region
      %39 = dma.done [#allocation6], 16
    $region17: #{tpu_custom_call.1} parent=1 // pred_fallthru
      _
    %v40 = vld [vmem:[#allocation2] sm:$0xff]
    %v41 = vld [vmem:[#allocation5] sm:$0x1]
    %v43 = vperm.slane %v41, 0
    %v45 = vsub.f32 %v40, %v43
    %v46 = vmul.f32 %v45, %v45
    %vm47 = vcmask 195584
    %v48 = vsel %vm47, %v46, 0.0
    %49 = vadd.xlane.f32.xlu0 %v48
    %v50 = vpop.xlane.xlu0 %49
    %v51 = vmul.f32 %v50, 2.5
    %52 = vxpose.xlu0.b32.start [1/16] %v51, 128
    %53 = vxpose.xlu0.b32.cont [2/16] 0.0, 128
    %54 = vxpose.xlu0.b32.cont [3/16] 0.0, 128
    %55 = vxpose.xlu0.b32.cont [4/16] 0.0, 128
    %56 = vxpose.xlu0.b32.cont [5/16] 0.0, 128
    %57 = vxpose.xlu0.b32.cont [6/16] 0.0, 128
    %58 = vxpose.xlu0.b32.cont [7/16] 0.0, 128
    %59 = vxpose.xlu0.b32.cont [8/16] 0.0, 128
    %60 = vxpose.xlu0.b32.cont [9/16] 0.0, 128
    %61 = vxpose.xlu0.b32.cont [10/16] 0.0, 128
    %62 = vxpose.xlu0.b32.cont [11/16] 0.0, 128
    %63 = vxpose.xlu0.b32.cont [12/16] 0.0, 128
    %64 = vxpose.xlu0.b32.cont [13/16] 0.0, 128
    %65 = vxpose.xlu0.b32.cont [14/16] 0.0, 128
    %66 = vxpose.xlu0.b32.cont [15/16] 0.0, 128
    %67 = vxpose.xlu0.b32.end [16/16] 0.0, 128
    %v68 = vpop.trf.xlu0
    %v69 = vpop.trf.xlu0
    %v70 = vpop.trf.xlu0
    %v71 = vpop.trf.xlu0
    %v72 = vpop.trf.xlu0
    %v73 = vpop.trf.xlu0
    %v74 = vpop.trf.xlu0
    %v75 = vpop.trf.xlu0
    %v76 = vpop.trf.xlu0
    %v77 = vpop.trf.xlu0
    %v78 = vpop.trf.xlu0
    %v79 = vpop.trf.xlu0
    %v80 = vpop.trf.xlu0
    %v81 = vpop.trf.xlu0
    %v82 = vpop.trf.xlu0
    %v83 = vpop.trf.xlu0
    %vm84 = vcmask 57344
    %85 = vst.msk [vmem:[#allocation7] sm:$0x1] %vm84, %v68
    // Predicated region
    $region18: #{tpu_custom_call.1} parent=1 // pred_check
      _
    $region19: #{tpu_custom_call.1} parent=1 // pred_check_branch
      %87 = sbr.rel (0) target = $region21
    $region20: #{tpu_custom_call.1} parent=1 // pred_region
      %89 = vsyncadd [#allocation4], 0
      %s91 = sshll.u32 [#allocation7], 4
      %s92 = int_to_ptr.vmem [resolvable:$true] %s91
      %s93 = sshll.u32 %s2, 4
      %s94 = int_to_ptr.hbm [resolvable:$true] %s93
      %96 = dma.vmem_to_hbm [thread:$0]  %s92, 16, %s94, [#allocation4]
    $region21: #{tpu_custom_call.1} parent=1 // pred_fallthru
      _
    // Predicated region
    $region22: #{tpu_custom_call.1} parent=1 // pred_check
      _
    $region23: #{tpu_custom_call.1} parent=1 // pred_check_branch
      %98 = sbr.rel (0) target = $region25
    $region24: #{tpu_custom_call.1} parent=1 // pred_region
      %100 = dma.done [#allocation4], 16
    $region25: #{tpu_custom_call.1} parent=1 // pred_fallthru
      _
    %101 = vsyncpa [#allocation3], 1
    %102 = vsyncpa [#allocation6], 1
    %103 = vsyncpa [#allocation4], 1

</llo_original>
